<compile_context>
chip_gen: v5e
topology: v5e:2x2
jax: 0.10.0
libtpu: 0.0.40
codegen_flags: <defaults>
</compile_context>

<pallas_src>
import jax
import jax.numpy as jnp
from jax.experimental import pallas as pl
from jax.experimental.pallas import tpu as pltpu


# ---------------------------------------------------------------------------
# Packed parameter buffer: (64, 16) f32.  Every sub-tensor starts at lane
# offset 0 and a sublane offset that is a multiple of 8 (free masked views):
#   W1 (16,  4) -> rows  0:16, cols 0:4      (torch layout: (out, in))
#   W2 ( 8, 16) -> rows 16:24, cols 0:16
#   W3 ( 3,  8) -> rows 24:27, cols 0:8
#   b1 (16,  1) -> rows 32:48, col 0
#   b2 ( 8,  1) -> rows 48:56, col 0
#   b3 ( 3,  1) -> rows 56:59, col 0
# ---------------------------------------------------------------------------
_PACK_SHAPE = (64, 16)
_TB_DEFAULT = 32768          # columns per grid step (multiple of 128)


def _round_up(n, m):
    return ((n + m - 1) // m) * m


def mlp_kernel(p_ref, x_ref, o_ref):
    # x tile is feature-major: (4, TB) with the batch on the 128-lane axis, so
    # bias-add / ReLU run on dense vregs and the (3, TB) store is lane-dense.
    x = x_ref[...].astype(jnp.bfloat16)

    # Aligned, relayout-free parameter views (weights -> bf16 for the MXU,
    # biases stay f32 and are added to the f32 accumulator).
    w1 = p_ref[0:16, 0:4].astype(jnp.bfloat16)     # (16, 4)
    w2 = p_ref[16:24, 0:16].astype(jnp.bfloat16)   # (8, 16)
    w3 = p_ref[24:27, 0:8].astype(jnp.bfloat16)    # (3, 8)
    b1 = p_ref[32:48, 0:1]                         # (16, 1) f32
    b2 = p_ref[48:56, 0:1]                         # (8, 1)  f32
    b3 = p_ref[56:59, 0:1]                         # (3, 1)  f32

    # Layer 1: (16,4) @ (4,TB) + b1 -> ReLU        (bf16 operands, f32 accum)
    h1 = jnp.maximum(
        jnp.dot(w1, x, preferred_element_type=jnp.float32) + b1, 0.0)
    # Layer 2: (8,16) @ (16,TB) + b2 -> ReLU
    h2 = jnp.maximum(
        jnp.dot(w2, h1.astype(jnp.bfloat16),
                preferred_element_type=jnp.float32) + b2, 0.0)
    # Layer 3: (3,8) @ (8,TB) + b3 -> lane-dense (3, TB) store
    o_ref[...] = (jnp.dot(w3, h2.astype(jnp.bfloat16),
                          preferred_element_type=jnp.float32) + b3
                  ).astype(o_ref.dtype)


def neural_diagnoser_forward(x, packed_params, *, tb=None, min_pallas_batch=1024):
    """NeuralDiagnoser forward.  x: (B, 4) f32 -> (B, 3) f32."""
    B = x.shape[0]

    # Small-batch fast path: for tiny B the transpose + kernel launch dominate
    # by orders of magnitude; run the plain 3-dot XLA graph instead.
    if min_pallas_batch and B < min_pallas_batch:
        w1, b1 = packed_params[0:16, 0:4], packed_params[32:48, 0]
        w2, b2 = packed_params[16:24, 0:16], packed_params[48:56, 0]
        w3, b3 = packed_params[24:27, 0:8], packed_params[56:59, 0]
        h1 = jnp.maximum(x @ w1.T + b1, 0.0)
        h2 = jnp.maximum(h1 @ w2.T + b2, 0.0)
        return h2 @ w3.T + b3

    # Feature-major view of the input (batch on the lane axis).  Pad the lane
    # dim only when B is not already 128-aligned (the common large-B perf case
    # pays no pad pass); the last grid tile may still be ragged w.r.t. tb —
    # Pallas discards OOB output columns and OOB input reads only feed columns
    # that are discarded (each output column depends only on its own input
    # column, so garbage cannot contaminate valid results).
    xt = x.T                                   # (4, B)
    b_pad = _round_up(B, 128)
    if b_pad != B:
        xt = jnp.pad(xt, ((0, 0), (0, b_pad - B)))

    if tb is None:
        if b_pad <= 128:
            tb = 128
        else:
            # Big tiles to amortize the ~0.35 us/step overhead, but keep >= 2
            # grid steps so v7x's second TensorCore gets work.
            tb = min(_TB_DEFAULT, _round_up(-(-b_pad // 2), 128))
    tb = min(tb, b_pad)
    num_tiles = -(-b_pad // tb)

    cost = pl.CostEstimate(
        flops=2 * b_pad * (4 * 16 + 16 * 8 + 8 * 3),
        transcendentals=0,
        bytes_accessed=(b_pad * (4 + 3) + _PACK_SHAPE[0] * _PACK_SHAPE[1]) * 4,
    )

    out_t = pl.pallas_call(
        mlp_kernel,
        out_shape=jax.ShapeDtypeStruct((3, b_pad), jnp.float32),
        grid=(num_tiles,),
        in_specs=[
            # Packed params: constant block index -> DMA'd once, VMEM-resident.
            pl.BlockSpec(_PACK_SHAPE, lambda i: (0, 0)),
            # x tile: (4, tb), batch on the lane axis, pipelined over the grid.
            pl.BlockSpec((4, tb), lambda i: (0, i)),
        ],
        out_specs=pl.BlockSpec((3, tb), lambda i: (0, i)),
        compiler_params=pltpu.CompilerParams(
            dimension_semantics=("parallel",),
            vmem_limit_bytes=32 * 1024 * 1024,
        ),
        cost_estimate=cost,
    )(packed_params, xt)

    # The [:, :B] slice fuses into the output transpose (single read pass).
    return out_t[:, :B].T


# ----------------------------- parameters ----------------------------------
def init_params(key):
    """torch.nn.Linear default init: U(-1/sqrt(fan_in), +1/sqrt(fan_in)),
    weights in torch layout (out_features, in_features)."""
    ks = jax.random.split(key, 6)

    def linear(kw, kb, fan_in, fan_out):
        bound = 1.0 / (fan_in ** 0.5)
        w = jax.random.uniform(kw, (fan_out, fan_in), jnp.float32, -bound, bound)
        b = jax.random.uniform(kb, (fan_out,), jnp.float32, -bound, bound)
        return w, b

    return (linear(ks[0], ks[1], 4, 16),
            linear(ks[2], ks[3], 16, 8),
            linear(ks[4], ks[5], 8, 3))


def pack_params(params):
    (w1, b1), (w2, b2), (w3, b3) = params
    p = jnp.zeros(_PACK_SHAPE, jnp.float32)
    p = p.at[0:16, 0:4].set(w1)
    p = p.at[16:24, 0:16].set(w2)
    p = p.at[24:27, 0:8].set(w3)
    p = p.at[32:48, 0].set(b1)
    p = p.at[48:56, 0].set(b2)
    p = p.at[56:59, 0].set(b3)
    return p


# ----------------------------- references ----------------------------------
def reference_forward_f32(x, params):
    """True-f32 reference (HIGHEST precision dots)."""
    (w1, b1), (w2, b2), (w3, b3) = params
    hi = jax.lax.Precision.HIGHEST
    h1 = jnp.maximum(jnp.dot(x, w1.T, precision=hi) + b1, 0.0)
    h2 = jnp.maximum(jnp.dot(h1, w2.T, precision=hi) + b2, 0.0)
    return jnp.dot(h2, w3.T, precision=hi) + b3


def reference_forward_bf16(x, params):
    """Reference that mirrors the kernel's bf16-operand / f32-accum matmuls."""
    (w1, b1), (w2, b2), (w3, b3) = params

    def lin(h, w, b):
        return jnp.dot(h.astype(jnp.bfloat16), w.T.astype(jnp.bfloat16),
                       preferred_element_type=jnp.float32) + b

    h1 = jnp.maximum(lin(x, w1, b1), 0.0)
    h2 = jnp.maximum(lin(h1, w2, b2), 0.0)
    return lin(h2, w3, b3)


# --------------------------------- demo -------------------------------------
if __name__ == "__main__":
    key = jax.random.PRNGKey(0)
    k_x, k_x2, k_p = jax.random.split(key, 3)

    params = init_params(k_p)
    packed = pack_params(params)

    # 1) Small batch, forced through the Pallas kernel (single 128-col tile).
    B = 8
    x = jax.random.normal(k_x, (B, 4), jnp.float32)
    out = jax.block_until_ready(
        neural_diagnoser_forward(x, packed, min_pallas_batch=0))
    assert out.shape == (B, 3)
    ref_bf = reference_forward_bf16(x, params)
    ref_f32 = reference_forward_f32(x, params)
    assert jnp.allclose(out, ref_bf, atol=5e-3, rtol=5e-3), (
        float(jnp.max(jnp.abs(out - ref_bf))))
    assert jnp.allclose(out, ref_f32, atol=5e-2, rtol=5e-2), (
        float(jnp.max(jnp.abs(out - ref_f32))))

    # 2) Multi-tile path with a ragged last tile (B=384 -> tb=256, 2 grid steps).
    B2 = 384
    x2 = jax.random.normal(k_x2, (B2, 4), jnp.float32)
    out2 = jax.block_until_ready(
        neural_diagnoser_forward(x2, packed, min_pallas_batch=0))
    assert out2.shape == (B2, 3)
    ref2 = reference_forward_bf16(x2, params)
    assert jnp.allclose(out2, ref2, atol=5e-3, rtol=5e-3), (
        float(jnp.max(jnp.abs(out2 - ref2))))

    # 3) Small-batch fallback path (no Pallas) still matches.
    out_fb = jax.block_until_ready(neural_diagnoser_forward(x, packed))
    assert jnp.allclose(out_fb, ref_f32, atol=5e-2, rtol=5e-2), (
        float(jnp.max(jnp.abs(out_fb - ref_f32))))

    print("KERNEL_OK")
</pallas_src>

<mosaic_0001>
module attributes {stable_mosaic.version = 11 : i64} {
  func.func @mlp_kernel(%arg0: i32, %arg1: memref<64x16xf32, #tpu.memory_space<vmem>>, %arg2: memref<4x128xf32, #tpu.memory_space<vmem>>, %arg3: memref<3x128xf32, #tpu.memory_space<vmem>>) attributes {dimension_semantics = [#tpu.dimension_semantics<parallel>], iteration_bounds = array<i64: 1>, scalar_prefetch = 0 : i64, scratch_operands = 0 : i64, tpu.core_type = #tpu.core_type<tc>, window_params = [{pipeline_mode = #tpu.pipeline_mode<synchronous>, transform_indices = @transform_0, window_bounds = array<i64: 64, 16>}, {transform_indices = @transform_1, window_bounds = array<i64: 4, 128>}, {transform_indices = @transform_2, window_bounds = array<i64: 3, 128>}]} {
    %c0 = arith.constant 0 : index
    %c0_0 = arith.constant 0 : index
    %0 = vector.load %arg2[%c0, %c0_0] : memref<4x128xf32, #tpu.memory_space<vmem>>, vector<4x128xf32>
    %1 = arith.truncf %0 : vector<4x128xf32> to vector<4x128xbf16>
    %c0_1 = arith.constant 0 : index
    %c0_2 = arith.constant 0 : index
    %2 = vector.load %arg1[%c0_1, %c0_2] : memref<64x16xf32, #tpu.memory_space<vmem>>, vector<16x4xf32>
    %3 = arith.truncf %2 : vector<16x4xf32> to vector<16x4xbf16>
    %c16 = arith.constant 16 : index
    %c0_3 = arith.constant 0 : index
    %4 = vector.load %arg1[%c16, %c0_3] : memref<64x16xf32, #tpu.memory_space<vmem>>, vector<8x16xf32>
    %5 = arith.truncf %4 : vector<8x16xf32> to vector<8x16xbf16>
    %c24 = arith.constant 24 : index
    %c0_4 = arith.constant 0 : index
    %6 = vector.load %arg1[%c24, %c0_4] : memref<64x16xf32, #tpu.memory_space<vmem>>, vector<3x8xf32>
    %7 = arith.truncf %6 : vector<3x8xf32> to vector<3x8xbf16>
    %c32 = arith.constant 32 : index
    %c0_5 = arith.constant 0 : index
    %8 = vector.load %arg1[%c32, %c0_5] : memref<64x16xf32, #tpu.memory_space<vmem>>, vector<16x1xf32>
    %c48 = arith.constant 48 : index
    %c0_6 = arith.constant 0 : index
    %9 = vector.load %arg1[%c48, %c0_6] : memref<64x16xf32, #tpu.memory_space<vmem>>, vector<8x1xf32>
    %c56 = arith.constant 56 : index
    %c0_7 = arith.constant 0 : index
    %10 = vector.load %arg1[%c56, %c0_7] : memref<64x16xf32, #tpu.memory_space<vmem>>, vector<3x1xf32>
    %cst = arith.constant dense<0.000000e+00> : vector<16x128xf32>
    %11 = tpu.matmul %3, %1, %cst {dimension_numbers = #tpu.dot_dimension_numbers<[1], [0], [0], [1], [0, 0, 1, 1], [], []>} : vector<16x4xbf16>, vector<4x128xbf16>, vector<16x128xf32> -> vector<16x128xf32>
    %12 = vector.broadcast %8 : vector<16x1xf32> to vector<16x128xf32>
    %13 = arith.addf %11, %12 : vector<16x128xf32>
    %cst_8 = arith.constant 0.000000e+00 : f32
    %14 = vector.broadcast %cst_8 : f32 to vector<16x128xf32>
    %15 = arith.maximumf %13, %14 : vector<16x128xf32>
    %16 = arith.truncf %15 : vector<16x128xf32> to vector<16x128xbf16>
    %cst_9 = arith.constant dense<0.000000e+00> : vector<8x128xf32>
    %17 = tpu.matmul %5, %16, %cst_9 {dimension_numbers = #tpu.dot_dimension_numbers<[1], [0], [0], [1], [0, 0, 1, 1], [], []>} : vector<8x16xbf16>, vector<16x128xbf16>, vector<8x128xf32> -> vector<8x128xf32>
    %18 = vector.broadcast %9 : vector<8x1xf32> to vector<8x128xf32>
    %19 = arith.addf %17, %18 : vector<8x128xf32>
    %cst_10 = arith.constant 0.000000e+00 : f32
    %20 = vector.broadcast %cst_10 : f32 to vector<8x128xf32>
    %21 = arith.maximumf %19, %20 : vector<8x128xf32>
    %22 = arith.truncf %21 : vector<8x128xf32> to vector<8x128xbf16>
    %cst_11 = arith.constant dense<0.000000e+00> : vector<3x128xf32>
    %23 = tpu.matmul %7, %22, %cst_11 {dimension_numbers = #tpu.dot_dimension_numbers<[1], [0], [0], [1], [0, 0, 1, 1], [], []>} : vector<3x8xbf16>, vector<8x128xbf16>, vector<3x128xf32> -> vector<3x128xf32>
    %24 = vector.broadcast %10 : vector<3x1xf32> to vector<3x128xf32>
    %25 = arith.addf %23, %24 : vector<3x128xf32>
    %c0_12 = arith.constant 0 : index
    %c0_13 = arith.constant 0 : index
    %26 = vector.load %arg3[%c0_12, %c0_13] : memref<3x128xf32, #tpu.memory_space<vmem>>, vector<3x128xf32>
    tpu.vector_store %arg3[%c0_12, %c0_13], %25 {strides = array<i32>} : memref<3x128xf32, #tpu.memory_space<vmem>>, vector<3x128xf32>,
    return
  }
  func.func @transform_0(%arg0: i32) -> (i32, i32) {
    %c0_i32 = arith.constant 0 : i32
    %c0_i32_0 = arith.constant 0 : i32
    %c0_i32_1 = arith.constant 0 : i32
    return %c0_i32, %c0_i32_0 : i32, i32
  }
  func.func @transform_1(%arg0: i32) -> (i32, i32) {
    %c0_i32 = arith.constant 0 : i32
    %c0_i32_0 = arith.constant 0 : i32
    return %c0_i32, %arg0 : i32, i32
  }
  func.func @transform_2(%arg0: i32) -> (i32, i32) {
    %c0_i32 = arith.constant 0 : i32
    %c0_i32_0 = arith.constant 0 : i32
    return %c0_i32, %arg0 : i32, i32
  }
}

</mosaic_0001>

<llo_original>
// kernel: tpu_custom_call.1
$region0: #{tpu_custom_call.1}
  #allocation0 [shape = 'u32[]', space=smem, size = 0x4, offset = 0x4, fixed_abs, tag = 'smem constant byte address 0x4 - core index']
  #allocation1 [shape = 'u32[72,128]{1,0:T(1,128)}', space=vmem, size = 0x9000, scoped, tag = 'internal scratch']
  %s0 = inlined_call_operand.vmem [shape: f32[64,16], index: 0, kind: input, shape index: {}]
  %s1 = inlined_call_operand.vmem [shape: f32[4,128], index: 1, kind: input, shape index: {}]
  %s2 = inlined_call_operand.hbm [shape: f32[3,128], index: 2, kind: output, shape index: {}]
  %s3 = sld [smem:[#allocation0]]
  $region18: #{tpu_custom_call.1} parent=0
    _
  %s5 = ssub.s32 1, %s3
  %s6 = scalar_select 0, %s5, %s3
  $region1: #{tpu_custom_call.1} parent=0
    #allocation2 [shape = 'u8[2048]{0}', space=vmem, size = 0x800, scoped, tag = 'output window, operand 0, single buffered']
    #allocation3 [shape = 's32[1]{0}', space=sflag, size = 0x4, scoped, tag = 'scoped memory for tpu_custom_call.1']
    %7 = vsyncpa [#allocation3], 0
    // Predicated region
    $region2: #{tpu_custom_call.1} parent=1 // pred_check
      _
    $region3: #{tpu_custom_call.1} parent=1 // pred_check_branch
      %9 = sbr.rel (0) target = $region5
    $region4: #{tpu_custom_call.1} parent=1 // pred_region
      _
    $region5: #{tpu_custom_call.1} parent=1 // pred_fallthru
      _
    // Predicated region
    $region6: #{tpu_custom_call.1} parent=1 // pred_check
      _
    $region7: #{tpu_custom_call.1} parent=1 // pred_check_branch
      %11 = sbr.rel (0) target = $region9
    $region8: #{tpu_custom_call.1} parent=1 // pred_region
      _
    $region9: #{tpu_custom_call.1} parent=1 // pred_fallthru
      _
    %v13 = vld [vmem:[%s1] sm:$0xf]
    %v14 = vpack.c.bf16 %v13, %v13
    %v15 = vld [vmem:[%s0] sm:$0xff]
    %v16 = vld [vmem:[%s0 + $0x8] sm:$0xff]
    %v17 = vpack.c.bf16 %v16, %v15
    %v18 = vld [vmem:[%s0 + $0x10] sm:$0xff]
    %v19 = vpack.c.bf16 %v18, %v18
    %v20 = vld [vmem:[%s0 + $0x18] sm:$0x7]
    %v21 = vpack.c.bf16 %v20, %v20
    %v22 = vld [vmem:[%s0 + $0x20] sm:$0xff]
    %v23 = vld [vmem:[%s0 + $0x28] sm:$0xff]
    %v24 = vld [vmem:[%s0 + $0x30] sm:$0xff]
    %v25 = vld [vmem:[%s0 + $0x38] sm:$0x7]
    %27 = vset.pattern.permute.xlu0 0
    %28 = vperm.xlu0 %27, %v22
    %v29 = vpop.permute.xlu0 %28
    %32 = vset.pattern.permute.xlu0 0
    %33 = vperm.xlu0 %32, %v23
    %v34 = vpop.permute.xlu0 %33
    %vm36 = vcmask 31744
    %v38 = vsel %vm36, %v17, 0
    %vm40 = vcmask 1041408
    %v42 = vsel %vm40, %v14, 0
    %44 = vmatpush.bf16.msra.mxu0 0
    %45 = vmatpush.bf16.msra.mxu0 0
    %46 = vmatpush.bf16.msra.mxu0 0
    %47 = vmatpush.bf16.msra.mxu0 0
    %48 = vmatpush.bf16.msra.mxu0 0
    %49 = vmatpush.bf16.msra.mxu0 0
    %50 = vmatpush.bf16.msra.mxu0 0
    %51 = vmatpush.bf16.msra.mxu0 %v42
    %52 = vmatmul.bf16.gmra.mxu0 %v38
    %v53 = vpop.f32.mrf.mxu0
    %v54 = vadd.f32 %v29, %v53
    %v55 = vpop.f32.mrf.mxu0
    %v56 = vadd.f32 %v34, %v55
    %57 = vdwg.mxu0
    %v58 = vmax.f32 %v54, 0.0
    %v59 = vmax.f32 %v56, 0.0
    %v60 = vpack.c.bf16 %v59, %v58
    %62 = vset.pattern.permute.xlu0 0
    %63 = vperm.xlu0 %62, %v24
    %v64 = vpop.permute.xlu0 %63
    %vm66 = vcmask 130048
    %v68 = vsel %vm66, %v19, 0
    %70 = vmatpush.bf16.msra.mxu0 0
    %71 = vmatpush.bf16.msra.mxu0 0
    %72 = vmatpush.bf16.msra.mxu0 0
    %73 = vmatpush.bf16.msra.mxu0 0
    %74 = vmatpush.bf16.msra.mxu0 0
    %75 = vmatpush.bf16.msra.mxu0 0
    %76 = vmatpush.bf16.msra.mxu0 0
    %77 = vmatpush.bf16.msra.mxu0 %v60
    %78 = vmatmul.bf16.gmra.mxu0 %v68
    %v79 = vpop.f32.mrf.mxu0
    %v80 = vadd.f32 %v64, %v79
    %v81 = vpop.f32.mrf.mxu0
    %82 = vdwg.mxu0
    %v83 = vmax.f32 %v80, 0.0
    %v84 = vpack.c.bf16 %v83, %v83
    %86 = vset.pattern.permute.xlu0 0
    %87 = vperm.xlu0 %86, %v25
    %v88 = vpop.permute.xlu0 %87
    %vm90 = vcmask 64512
    %v92 = vsel %vm90, %v21, 0
    %vm94 = vcmask 1043456
    %v96 = vsel %vm94, %v84, 0
    %98 = vmatpush.bf16.msra.mxu0 0
    %99 = vmatpush.bf16.msra.mxu0 0
    %100 = vmatpush.bf16.msra.mxu0 0
    %101 = vmatpush.bf16.msra.mxu0 0
    %102 = vmatpush.bf16.msra.mxu0 0
    %103 = vmatpush.bf16.msra.mxu0 0
    %104 = vmatpush.bf16.msra.mxu0 0
    %105 = vmatpush.bf16.msra.mxu0 %v96
    %106 = vmatmul.bf16.gmra.mxu0 %v92
    %v107 = vpop.f32.mrf.mxu0
    %v108 = vadd.f32 %v88, %v107
    %v109 = vpop.f32.mrf.mxu0
    %110 = vdwg.mxu0
    %111 = vst [vmem:[#allocation2] sm:$0x7] %v108
    // Predicated region
    $region10: #{tpu_custom_call.1} parent=1 // pred_check
      _
    $region11: #{tpu_custom_call.1} parent=1 // pred_check_branch
      %113 = sbr.rel (0) target = $region13
    $region12: #{tpu_custom_call.1} parent=1 // pred_region
      %115 = vsyncadd [#allocation3], 0
      %s117 = sshll.u32 [#allocation2], 4
      %s118 = int_to_ptr.vmem [resolvable:$true] %s117
      %s119 = sshll.u32 %s2, 4
      %s120 = int_to_ptr.hbm [resolvable:$true] %s119
      %122 = dma.vmem_to_hbm [thread:$0]  %s118, 64, %s120, [#allocation3]
    $region13: #{tpu_custom_call.1} parent=1 // pred_fallthru
      _
    // Predicated region
    $region14: #{tpu_custom_call.1} parent=1 // pred_check
      _
    $region15: #{tpu_custom_call.1} parent=1 // pred_check_branch
      %124 = sbr.rel (0) target = $region17
    $region16: #{tpu_custom_call.1} parent=1 // pred_region
      %126 = dma.done [#allocation3], 64
    $region17: #{tpu_custom_call.1} parent=1 // pred_fallthru
      _
    %127 = vsyncpa [#allocation3], 1

</llo_original>
